<compile_context>
chip_gen: v5e
topology: v5e:2x2
jax: 0.10.0
libtpu: 0.0.40
codegen_flags: <defaults>
</compile_context>

<pallas_src>
import math
import functools

import jax
import jax.numpy as jnp
import numpy as np
from jax.experimental import pallas as pl
from jax.experimental.pallas import tpu as pltpu

NEG_INF = -1e30                      # finite mask bias: exp underflows to exactly 0, no NaN
VMEM_LIMIT = 64 * 1024 * 1024        # explicit scoped-VMEM limit (safe on v5e/v6e/v7x)


# ----------------------------- Pallas kernels -----------------------------
def kv_proj_kernel(n_heads, d_qk, d_v,
                   k_in_ref, v_in_ref, wk_ref, bk_ref, wv_ref, bv_ref,
                   k_out_ref, v_out_ref):
    """K/V projection for one (batch, seq-tile); outputs head-major (H, TS, E) bf16."""
    kf = jnp.dot(k_in_ref[...], wk_ref[...], preferred_element_type=jnp.float32) + bk_ref[...]
    vf = jnp.dot(v_in_ref[...], wv_ref[...], preferred_element_type=jnp.float32) + bv_ref[...]
    kf = kf.astype(jnp.bfloat16)
    vf = vf.astype(jnp.bfloat16)
    # head-major scatter: static lane slices, unrolled over the (small) head count
    for h in range(n_heads):
        k_out_ref[h] = kf[:, h * d_qk:(h + 1) * d_qk]
        v_out_ref[h] = vf[:, h * d_v:(h + 1) * d_v]


def flash_attn_kernel(n_heads, d_qk, d_v, tl, tk, causal,
                      lens_ref,                                    # scalar prefetch (B,) int32
                      q_in_ref, wq_ref, bq_ref, k_ref, v_ref, wo_ref, bo_ref,
                      out_ref,
                      q_scr, m_scr, l_scr, acc_scr):
    """Fused Q-proj + flash attention (online softmax over KV tiles) + output projection."""
    b = pl.program_id(0)
    lt = pl.program_id(1)
    st = pl.program_id(2)
    n_kv = pl.num_programs(2)

    vlen = lens_ref[b]
    last_needed = (vlen + tk - 1) // tk - 1            # last KV tile with any valid key
    if causal:
        last_needed = jnp.minimum(last_needed, ((lt + 1) * tl - 1) // tk)
    active = st <= last_needed                          # skip padded / future KV tiles

    scale = 1.0 / math.sqrt(d_qk)

    @pl.when(st == 0)
    def _init():
        # Q projection fused here (once per query tile) -> no Q HBM round trip.
        qf = jnp.dot(q_in_ref[...], wq_ref[...], preferred_element_type=jnp.float32)
        qf = ((qf + bq_ref[...]) * scale).astype(jnp.bfloat16)     # scale folded into Q
        for h in range(n_heads):
            q_scr[h] = qf[:, h * d_qk:(h + 1) * d_qk]
        m_scr[...] = jnp.full(m_scr.shape, NEG_INF, jnp.float32)
        l_scr[...] = jnp.zeros(l_scr.shape, jnp.float32)
        acc_scr[...] = jnp.zeros(acc_scr.shape, jnp.float32)

    @pl.when(active)
    def _step():
        q = q_scr[...]                                   # (H, TL, E)  bf16, pre-scaled
        k = k_ref[...]                                   # (H, TK, E)  bf16
        v = v_ref[...]                                   # (H, TK, Ev) bf16
        # batched-head scores on the MXU, leading batch dim, f32 accumulation
        s = jax.lax.dot_general(q, k, (((2,), (2,)), ((0,), (0,))),
                                preferred_element_type=jnp.float32)        # (H, TL, TK)
        # mask rebuilt in-kernel (causal + key padding), no HBM mask traffic
        row = lt * tl + jax.lax.broadcasted_iota(jnp.int32, (tl, tk), 0)
        col = st * tk + jax.lax.broadcasted_iota(jnp.int32, (tl, tk), 1)
        masked = col >= vlen
        if causal:
            masked = jnp.logical_or(masked, col > row)
        s = jnp.where(masked[None, :, :], NEG_INF, s)

        m_prev = m_scr[...]
        m_new = jnp.maximum(m_prev, jnp.max(s, axis=-1, keepdims=True))
        alpha = jnp.exp(m_prev - m_new)
        p = jnp.exp(s - m_new)
        l_scr[...] = alpha * l_scr[...] + jnp.sum(p, axis=-1, keepdims=True)
        pv = jax.lax.dot_general(p.astype(jnp.bfloat16), v,
                                 (((2,), (1,)), ((0,), (0,))),
                                 preferred_element_type=jnp.float32)       # (H, TL, Ev)
        acc_scr[...] = alpha * acc_scr[...] + pv
        m_scr[...] = m_new

    @pl.when(st == n_kv - 1)
    def _finalize():
        l = l_scr[...]
        # fully-masked rows (valid_len == 0) get a zero context instead of NaN
        inv_l = jnp.where(l > 0.0, pl.reciprocal(l, approx=True), 0.0)
        ctx = (acc_scr[...] * inv_l).astype(jnp.bfloat16)                  # (H, TL, Ev)
        # output projection against head-major wo (H, Ev, D); reduce over heads
        o = jax.lax.dot_general(ctx, wo_ref[...], (((2,), (1,)), ((0,), (0,))),
                                preferred_element_type=jnp.float32)        # (H, TL, D)
        out_ref[...] = jnp.sum(o, axis=0) + bo_ref[...]


def attn_weights_kernel(n_heads, d_qk, tl, causal,
                        lens_ref, q_in_ref, wq_ref, bq_ref, k_ref, attn_ref):
    """Optional path: materialize normalized attention weights (B, H, L, S).
    Debug / output_attention=True only -- materializes full (TL, S) scores per head."""
    b = pl.program_id(0)
    lt = pl.program_id(1)
    s_len = k_ref.shape[1]
    vlen = lens_ref[b]
    scale = 1.0 / math.sqrt(d_qk)

    qf = (jnp.dot(q_in_ref[...], wq_ref[...], preferred_element_type=jnp.float32)
          + bq_ref[...]) * scale
    qf = qf.astype(jnp.bfloat16)

    row = lt * tl + jax.lax.broadcasted_iota(jnp.int32, (tl, s_len), 0)
    col = jax.lax.broadcasted_iota(jnp.int32, (tl, s_len), 1)
    masked = col >= vlen
    if causal:
        masked = jnp.logical_or(masked, col > row)

    for h in range(n_heads):
        q_h = qf[:, h * d_qk:(h + 1) * d_qk]                               # (TL, E)
        s = jax.lax.dot_general(q_h, k_ref[h], (((1,), (1,)), ((), ())),
                                preferred_element_type=jnp.float32)        # (TL, S)
        s = jnp.where(masked, NEG_INF, s)
        m = jnp.max(s, axis=-1, keepdims=True)
        p = jnp.exp(s - m)
        attn_ref[h] = p / jnp.sum(p, axis=-1, keepdims=True)


# ----------------------------- pallas_call wrappers -----------------------------
def _full_spec(a):
    n = a.ndim
    return pl.BlockSpec(a.shape, lambda *_, n=n: (0,) * n)


def _pick_tile(n, pref):
    # Preferred tile if it divides n, else fall back to the full extent.
    # TODO(synk): handle remainder tiles for n not divisible by the preferred tile.
    return pref if (n >= pref and n % pref == 0) else n


def run_kv_proj(kb, vb, p, n_heads, ts):
    B, S, D = kb.shape
    d_qk = p['wk'].shape[1] // n_heads
    d_v = p['wv'].shape[1] // n_heads
    weights = [p['wk'], p['bk'], p['wv'], p['bv']]
    in_map = lambda b, s: (b, s, 0)
    return pl.pallas_call(
        functools.partial(kv_proj_kernel, n_heads, d_qk, d_v),
        out_shape=[jax.ShapeDtypeStruct((B, n_heads, S, d_qk), jnp.bfloat16),
                   jax.ShapeDtypeStruct((B, n_heads, S, d_v), jnp.bfloat16)],
        grid=(B, S // ts),
        in_specs=([pl.BlockSpec((None, ts, D), in_map),
                   pl.BlockSpec((None, ts, D), in_map)]
                  + [_full_spec(a) for a in weights]),
        out_specs=[pl.BlockSpec((None, n_heads, ts, d_qk), lambda b, s: (b, 0, s, 0)),
                   pl.BlockSpec((None, n_heads, ts, d_v), lambda b, s: (b, 0, s, 0))],
        compiler_params=pltpu.CompilerParams(
            dimension_semantics=("parallel", "parallel"),
            vmem_limit_bytes=VMEM_LIMIT),
    )(kb, vb, *weights)


def run_flash_attention(qb, k_hm, v_hm, lens, p, n_heads, tl, tk, causal):
    B, L, D = qb.shape
    S = k_hm.shape[2]
    d_qk = k_hm.shape[3]
    d_v = v_hm.shape[3]
    n_kv = S // tk

    q_map = lambda b, lt, st, lens_ref: (b, lt, 0)
    out_map = lambda b, lt, st, lens_ref: (b, lt, 0)

    def kv_map(b, lt, st, lens_ref):
        # Clamp the KV block index: skipped (future-causal / fully-padded) tiles become
        # revisited blocks -> their DMA is elided; compute is gated in-kernel with pl.when.
        bound = jnp.maximum((lens_ref[b] + tk - 1) // tk - 1, 0)
        if causal:
            bound = jnp.minimum(bound, ((lt + 1) * tl - 1) // tk)
        return (b, 0, jnp.minimum(st, bound), 0)

    grid_spec = pltpu.PrefetchScalarGridSpec(
        num_scalar_prefetch=1,
        grid=(B, L // tl, n_kv),
        in_specs=[pl.BlockSpec((None, tl, D), q_map),                 # query tile (bf16)
                  _full_spec(p['wq']), _full_spec(p['bq']),           # Q proj weights
                  pl.BlockSpec((None, n_heads, tk, d_qk), kv_map),    # K tile, head-major
                  pl.BlockSpec((None, n_heads, tk, d_v), kv_map),     # V tile, head-major
                  _full_spec(p['wo_hm']), _full_spec(p['bo'])],       # out-proj weights
        out_specs=pl.BlockSpec((None, tl, D), out_map),
        scratch_shapes=[pltpu.VMEM((n_heads, tl, d_qk), jnp.bfloat16),   # cached scaled Q
                        pltpu.VMEM((n_heads, tl, 1), jnp.float32),       # running max m
                        pltpu.VMEM((n_heads, tl, 1), jnp.float32),       # running sum l
                        pltpu.VMEM((n_heads, tl, d_v), jnp.float32)],    # acc
    )
    return pl.pallas_call(
        functools.partial(flash_attn_kernel, n_heads, d_qk, d_v, tl, tk, causal),
        out_shape=jax.ShapeDtypeStruct((B, L, D), jnp.float32),
        grid_spec=grid_spec,
        compiler_params=pltpu.CompilerParams(
            dimension_semantics=("parallel", "parallel", "arbitrary"),
            vmem_limit_bytes=VMEM_LIMIT),
    )(lens, qb, p['wq'], p['bq'], k_hm, v_hm, p['wo_hm'], p['bo'])


def run_attn_weights(qb, k_hm, lens, p, n_heads, tl, causal):
    B, L, D = qb.shape
    S = k_hm.shape[2]
    d_qk = k_hm.shape[3]
    grid_spec = pltpu.PrefetchScalarGridSpec(
        num_scalar_prefetch=1,
        grid=(B, L // tl),
        in_specs=[pl.BlockSpec((None, tl, D), lambda b, lt, lens_ref: (b, lt, 0)),
                  _full_spec(p['wq']), _full_spec(p['bq']),
                  pl.BlockSpec((None, n_heads, S, d_qk), lambda b, lt, lens_ref: (b, 0, 0, 0))],
        out_specs=pl.BlockSpec((None, n_heads, tl, S), lambda b, lt, lens_ref: (b, 0, lt, 0)),
    )
    return pl.pallas_call(
        functools.partial(attn_weights_kernel, n_heads, d_qk, tl, causal),
        out_shape=jax.ShapeDtypeStruct((B, n_heads, L, S), jnp.float32),
        grid_spec=grid_spec,
        compiler_params=pltpu.CompilerParams(
            dimension_semantics=("parallel", "parallel"),
            vmem_limit_bytes=VMEM_LIMIT),
    )(lens, qb, p['wq'], p['bq'], k_hm)


# ----------------------------- forward pass (AttentionLayer.forward) -----------------------------
def attention_layer_forward(prep, n_heads, queries, keys, values, valid_lens, *,
                            causal=True, return_attn=False,
                            tl_pref=256, tk_pref=256):
    """Equivalent of AttentionLayer.forward with masked scaled-dot-product attention.

    The (causal + right-padding) attn_mask is expressed as per-batch valid key lengths and
    rebuilt in-kernel from iota (no (B, L, S) mask DMA).  dropout_qkv is identity (eval / p=0).
    tl_pref/tk_pref: 256 matches the v6e/v7x 256x256 MXU; use 128 on v5e.
    """
    B, L, D = queries.shape
    S = keys.shape[1]
    tl = _pick_tile(L, tl_pref)
    tk = _pick_tile(S, tk_pref)
    ts = _pick_tile(S, tk_pref)

    # One-time bf16 cast of the activations (halves DMA into the kernels).
    qb = queries.astype(jnp.bfloat16)
    kb = keys.astype(jnp.bfloat16)
    vb = values.astype(jnp.bfloat16)
    lens = valid_lens.astype(jnp.int32)

    k_hm, v_hm = run_kv_proj(kb, vb, prep, n_heads, ts)            # (B, H, S, E) bf16
    out = run_flash_attention(qb, k_hm, v_hm, lens, prep, n_heads, tl, tk, causal)

    attn = None
    if return_attn:
        attn = run_attn_weights(qb, k_hm, lens, prep, n_heads, tl, causal)
    return out, attn


# ----------------------------- parameter handling -----------------------------
def init_params(key, d_model, d_qk, d_v, n_heads):
    ks = jax.random.split(key, 4)

    def dense(k, din, dout):
        kw, kb = jax.random.split(k)
        bound = 1.0 / math.sqrt(din)
        w = jax.random.uniform(kw, (din, dout), jnp.float32, -bound, bound)
        b = jax.random.uniform(kb, (1, dout), jnp.float32, -bound, bound)
        return w, b

    wq, bq = dense(ks[0], d_model, d_qk * n_heads)
    wk, bk = dense(ks[1], d_model, d_qk * n_heads)
    wv, bv = dense(ks[2], d_model, d_v * n_heads)
    wo, bo = dense(ks[3], d_v * n_heads, d_model)
    return dict(wq=wq, bq=bq, wk=wk, bk=bk, wv=wv, bv=bv, wo=wo, bo=bo)


def prepare_params(p, n_heads):
    """Pre-cast matmul weights to bf16 and pre-reshape wo head-major ONCE (outside forward)."""
    d_v = p['wv'].shape[1] // n_heads
    d_model = p['wo'].shape[1]
    return dict(
        wq=p['wq'].astype(jnp.bfloat16), bq=p['bq'],
        wk=p['wk'].astype(jnp.bfloat16), bk=p['bk'],
        wv=p['wv'].astype(jnp.bfloat16), bv=p['bv'],
        wo_hm=p['wo'].reshape(n_heads, d_v, d_model).astype(jnp.bfloat16),
        bo=p['bo'])


# ----------------------------- pure-JAX f32 reference (PyTorch semantics) -----------------------------
def reference_forward(params, n_heads, queries, keys, values, attn_mask):
    B, L, D = queries.shape
    S = keys.shape[1]
    H = n_heads
    E = params['wq'].shape[1] // H
    Ev = params['wv'].shape[1] // H
    q = (queries @ params['wq'] + params['bq']).reshape(B, L, H, E)
    k = (keys @ params['wk'] + params['bk']).reshape(B, S, H, E)
    v = (values @ params['wv'] + params['bv']).reshape(B, S, H, Ev)
    scores = jnp.einsum('blhe,bshe->bhls', q, k)
    scores = jnp.where(attn_mask[:, None], -jnp.inf, scores)
    A = jax.nn.softmax(scores / math.sqrt(E), axis=-1)
    out = jnp.einsum('bhls,bshd->blhd', A, v).reshape(B, L, H * Ev)
    out = out @ params['wo'] + params['bo']
    return out, A


if __name__ == "__main__":
    # Small shapes that still exercise multi-tile online softmax + causal/padding tile skipping.
    B, L, D, H = 2, 16, 32, 4
    D_QK = D_V = D // H                           # 8
    TL = TK = 8                                   # tiny demo tiles (defaults are 256)

    key = jax.random.PRNGKey(0)
    kp, kq, kk, kv = jax.random.split(key, 4)
    params = init_params(kp, D, D_QK, D_V, H)
    prep = prepare_params(params, H)

    queries = jax.random.normal(kq, (B, L, D), jnp.float32)
    keys_in = jax.random.normal(kk, (B, L, D), jnp.float32)
    values_in = jax.random.normal(kv, (B, L, D), jnp.float32)
    # right-padding key lengths: batch 0 full, batch 1 has 8 valid keys (whole KV tile skipped)
    valid_lens = jnp.array([L, 8], jnp.int32)

    out, attn = attention_layer_forward(prep, H, queries, keys_in, values_in, valid_lens,
                                        causal=True, return_attn=True,
                                        tl_pref=TL, tk_pref=TK)
    out = jax.block_until_ready(out)
    attn = jax.block_until_ready(attn)
    assert out.shape == (B, L, D) and out.dtype == jnp.float32
    assert attn.shape == (B, H, L, L)
    assert bool(jnp.all(jnp.isfinite(out)))

    # Reference with the equivalent dense (causal OR key-padding) mask, True == masked.
    causal_mask = jnp.triu(jnp.ones((L, L), dtype=bool), k=1)
    pad = jnp.arange(L)[None, :] >= valid_lens[:, None]
    attn_mask = jnp.logical_or(causal_mask[None], pad[:, None, :])
    with jax.default_matmul_precision('float32'):
        ref_out, ref_attn = reference_forward(params, H, queries, keys_in, values_in, attn_mask)
        ref_out = jax.block_until_ready(ref_out)

    # bf16 MXU path + approx reciprocal vs f32 reference: ~2% tolerance.
    np.testing.assert_allclose(np.asarray(out), np.asarray(ref_out), rtol=2e-2, atol=2e-2)
    np.testing.assert_allclose(np.asarray(attn), np.asarray(ref_attn), rtol=2e-2, atol=2e-2)

    print("KERNEL_OK")
</pallas_src>

<mosaic_0001>
module attributes {stable_mosaic.version = 11 : i64} {
  func.func @kv_proj_kernel(%arg0: i32, %arg1: i32, %arg2: memref<1x8x32xbf16, #tpu.memory_space<vmem>>, %arg3: memref<1x8x32xbf16, #tpu.memory_space<vmem>>, %arg4: memref<32x32xbf16, #tpu.memory_space<vmem>>, %arg5: memref<1x32xf32, #tpu.memory_space<vmem>>, %arg6: memref<32x32xbf16, #tpu.memory_space<vmem>>, %arg7: memref<1x32xf32, #tpu.memory_space<vmem>>, %arg8: memref<1x4x8x8xbf16, #tpu.memory_space<vmem>>, %arg9: memref<1x4x8x8xbf16, #tpu.memory_space<vmem>>) attributes {dimension_semantics = [#tpu.dimension_semantics<parallel>, #tpu.dimension_semantics<parallel>], iteration_bounds = array<i64: 2, 2>, scalar_prefetch = 0 : i64, scratch_operands = 0 : i64, tpu.core_type = #tpu.core_type<tc>, window_params = [{transform_indices = @transform_0, window_bounds = array<i64: 1, 8, 32>}, {transform_indices = @transform_1, window_bounds = array<i64: 1, 8, 32>}, {pipeline_mode = #tpu.pipeline_mode<synchronous>, transform_indices = @transform_2, window_bounds = array<i64: 32, 32>}, {pipeline_mode = #tpu.pipeline_mode<synchronous>, transform_indices = @transform_3, window_bounds = array<i64: 1, 32>}, {pipeline_mode = #tpu.pipeline_mode<synchronous>, transform_indices = @transform_4, window_bounds = array<i64: 32, 32>}, {pipeline_mode = #tpu.pipeline_mode<synchronous>, transform_indices = @transform_5, window_bounds = array<i64: 1, 32>}, {transform_indices = @transform_6, window_bounds = array<i64: 1, 4, 8, 8>}, {transform_indices = @transform_7, window_bounds = array<i64: 1, 4, 8, 8>}]} {
    %c0 = arith.constant 0 : index
    %c0_0 = arith.constant 0 : index
    %c0_1 = arith.constant 0 : index
    %0 = vector.load %arg2[%c0, %c0_0, %c0_1] : memref<1x8x32xbf16, #tpu.memory_space<vmem>>, vector<1x8x32xbf16>
    %1 = vector.shape_cast %0 : vector<1x8x32xbf16> to vector<8x32xbf16>
    %c0_2 = arith.constant 0 : index
    %c0_3 = arith.constant 0 : index
    %2 = vector.load %arg4[%c0_2, %c0_3] : memref<32x32xbf16, #tpu.memory_space<vmem>>, vector<32x32xbf16>
    %cst = arith.constant dense<0.000000e+00> : vector<8x32xf32>
    %3 = tpu.matmul %1, %2, %cst {dimension_numbers = #tpu.dot_dimension_numbers<[1], [0], [0], [1], [0, 0, 1, 1], [], []>} : vector<8x32xbf16>, vector<32x32xbf16>, vector<8x32xf32> -> vector<8x32xf32>
    %c0_4 = arith.constant 0 : index
    %c0_5 = arith.constant 0 : index
    %4 = vector.load %arg5[%c0_4, %c0_5] : memref<1x32xf32, #tpu.memory_space<vmem>>, vector<1x32xf32>
    %5 = vector.broadcast %4 : vector<1x32xf32> to vector<8x32xf32>
    %6 = arith.addf %3, %5 : vector<8x32xf32>
    %c0_6 = arith.constant 0 : index
    %c0_7 = arith.constant 0 : index
    %c0_8 = arith.constant 0 : index
    %7 = vector.load %arg3[%c0_6, %c0_7, %c0_8] : memref<1x8x32xbf16, #tpu.memory_space<vmem>>, vector<1x8x32xbf16>
    %8 = vector.shape_cast %7 : vector<1x8x32xbf16> to vector<8x32xbf16>
    %c0_9 = arith.constant 0 : index
    %c0_10 = arith.constant 0 : index
    %9 = vector.load %arg6[%c0_9, %c0_10] : memref<32x32xbf16, #tpu.memory_space<vmem>>, vector<32x32xbf16>
    %cst_11 = arith.constant dense<0.000000e+00> : vector<8x32xf32>
    %10 = tpu.matmul %8, %9, %cst_11 {dimension_numbers = #tpu.dot_dimension_numbers<[1], [0], [0], [1], [0, 0, 1, 1], [], []>} : vector<8x32xbf16>, vector<32x32xbf16>, vector<8x32xf32> -> vector<8x32xf32>
    %c0_12 = arith.constant 0 : index
    %c0_13 = arith.constant 0 : index
    %11 = vector.load %arg7[%c0_12, %c0_13] : memref<1x32xf32, #tpu.memory_space<vmem>>, vector<1x32xf32>
    %12 = vector.broadcast %11 : vector<1x32xf32> to vector<8x32xf32>
    %13 = arith.addf %10, %12 : vector<8x32xf32>
    %14 = arith.truncf %6 : vector<8x32xf32> to vector<8x32xbf16>
    %15 = arith.truncf %13 : vector<8x32xf32> to vector<8x32xbf16>
    %16 = vector.extract_strided_slice %14 {offsets = [0, 0], sizes = [8, 8], strides = [1, 1]} : vector<8x32xbf16> to vector<8x8xbf16>
    %c0_14 = arith.constant 0 : index
    %c0_15 = arith.constant 0 : index
    %c0_16 = arith.constant 0 : index
    %c0_17 = arith.constant 0 : index
    %17 = vector.load %arg8[%c0_14, %c0_15, %c0_16, %c0_17] : memref<1x4x8x8xbf16, #tpu.memory_space<vmem>>, vector<1x1x8x8xbf16>
    %18 = vector.shape_cast %17 : vector<1x1x8x8xbf16> to vector<8x8xbf16>
    %19 = vector.shape_cast %16 : vector<8x8xbf16> to vector<1x1x8x8xbf16>
    tpu.vector_store %arg8[%c0_14, %c0_15, %c0_16, %c0_17], %19 {strides = array<i32>} : memref<1x4x8x8xbf16, #tpu.memory_space<vmem>>, vector<1x1x8x8xbf16>,
    %20 = vector.extract_strided_slice %15 {offsets = [0, 0], sizes = [8, 8], strides = [1, 1]} : vector<8x32xbf16> to vector<8x8xbf16>
    %c0_18 = arith.constant 0 : index
    %c0_19 = arith.constant 0 : index
    %c0_20 = arith.constant 0 : index
    %c0_21 = arith.constant 0 : index
    %21 = vector.load %arg9[%c0_18, %c0_19, %c0_20, %c0_21] : memref<1x4x8x8xbf16, #tpu.memory_space<vmem>>, vector<1x1x8x8xbf16>
    %22 = vector.shape_cast %21 : vector<1x1x8x8xbf16> to vector<8x8xbf16>
    %23 = vector.shape_cast %20 : vector<8x8xbf16> to vector<1x1x8x8xbf16>
    tpu.vector_store %arg9[%c0_18, %c0_19, %c0_20, %c0_21], %23 {strides = array<i32>} : memref<1x4x8x8xbf16, #tpu.memory_space<vmem>>, vector<1x1x8x8xbf16>,
    %24 = vector.extract_strided_slice %14 {offsets = [0, 8], sizes = [8, 8], strides = [1, 1]} : vector<8x32xbf16> to vector<8x8xbf16>
    %c0_22 = arith.constant 0 : index
    %c1 = arith.constant 1 : index
    %c0_23 = arith.constant 0 : index
    %c0_24 = arith.constant 0 : index
    %25 = vector.load %arg8[%c0_22, %c1, %c0_23, %c0_24] : memref<1x4x8x8xbf16, #tpu.memory_space<vmem>>, vector<1x1x8x8xbf16>
    %26 = vector.shape_cast %25 : vector<1x1x8x8xbf16> to vector<8x8xbf16>
    %27 = vector.shape_cast %24 : vector<8x8xbf16> to vector<1x1x8x8xbf16>
    tpu.vector_store %arg8[%c0_22, %c1, %c0_23, %c0_24], %27 {strides = array<i32>} : memref<1x4x8x8xbf16, #tpu.memory_space<vmem>>, vector<1x1x8x8xbf16>,
    %28 = vector.extract_strided_slice %15 {offsets = [0, 8], sizes = [8, 8], strides = [1, 1]} : vector<8x32xbf16> to vector<8x8xbf16>
    %c0_25 = arith.constant 0 : index
    %c1_26 = arith.constant 1 : index
    %c0_27 = arith.constant 0 : index
    %c0_28 = arith.constant 0 : index
    %29 = vector.load %arg9[%c0_25, %c1_26, %c0_27, %c0_28] : memref<1x4x8x8xbf16, #tpu.memory_space<vmem>>, vector<1x1x8x8xbf16>
    %30 = vector.shape_cast %29 : vector<1x1x8x8xbf16> to vector<8x8xbf16>
    %31 = vector.shape_cast %28 : vector<8x8xbf16> to vector<1x1x8x8xbf16>
    tpu.vector_store %arg9[%c0_25, %c1_26, %c0_27, %c0_28], %31 {strides = array<i32>} : memref<1x4x8x8xbf16, #tpu.memory_space<vmem>>, vector<1x1x8x8xbf16>,
    %32 = vector.extract_strided_slice %14 {offsets = [0, 16], sizes = [8, 8], strides = [1, 1]} : vector<8x32xbf16> to vector<8x8xbf16>
    %c0_29 = arith.constant 0 : index
    %c2 = arith.constant 2 : index
    %c0_30 = arith.constant 0 : index
    %c0_31 = arith.constant 0 : index
    %33 = vector.load %arg8[%c0_29, %c2, %c0_30, %c0_31] : memref<1x4x8x8xbf16, #tpu.memory_space<vmem>>, vector<1x1x8x8xbf16>
    %34 = vector.shape_cast %33 : vector<1x1x8x8xbf16> to vector<8x8xbf16>
    %35 = vector.shape_cast %32 : vector<8x8xbf16> to vector<1x1x8x8xbf16>
    tpu.vector_store %arg8[%c0_29, %c2, %c0_30, %c0_31], %35 {strides = array<i32>} : memref<1x4x8x8xbf16, #tpu.memory_space<vmem>>, vector<1x1x8x8xbf16>,
    %36 = vector.extract_strided_slice %15 {offsets = [0, 16], sizes = [8, 8], strides = [1, 1]} : vector<8x32xbf16> to vector<8x8xbf16>
    %c0_32 = arith.constant 0 : index
    %c2_33 = arith.constant 2 : index
    %c0_34 = arith.constant 0 : index
    %c0_35 = arith.constant 0 : index
    %37 = vector.load %arg9[%c0_32, %c2_33, %c0_34, %c0_35] : memref<1x4x8x8xbf16, #tpu.memory_space<vmem>>, vector<1x1x8x8xbf16>
    %38 = vector.shape_cast %37 : vector<1x1x8x8xbf16> to vector<8x8xbf16>
    %39 = vector.shape_cast %36 : vector<8x8xbf16> to vector<1x1x8x8xbf16>
    tpu.vector_store %arg9[%c0_32, %c2_33, %c0_34, %c0_35], %39 {strides = array<i32>} : memref<1x4x8x8xbf16, #tpu.memory_space<vmem>>, vector<1x1x8x8xbf16>,
    %40 = vector.extract_strided_slice %14 {offsets = [0, 24], sizes = [8, 8], strides = [1, 1]} : vector<8x32xbf16> to vector<8x8xbf16>
    %c0_36 = arith.constant 0 : index
    %c3 = arith.constant 3 : index
    %c0_37 = arith.constant 0 : index
    %c0_38 = arith.constant 0 : index
    %41 = vector.load %arg8[%c0_36, %c3, %c0_37, %c0_38] : memref<1x4x8x8xbf16, #tpu.memory_space<vmem>>, vector<1x1x8x8xbf16>
    %42 = vector.shape_cast %41 : vector<1x1x8x8xbf16> to vector<8x8xbf16>
    %43 = vector.shape_cast %40 : vector<8x8xbf16> to vector<1x1x8x8xbf16>
    tpu.vector_store %arg8[%c0_36, %c3, %c0_37, %c0_38], %43 {strides = array<i32>} : memref<1x4x8x8xbf16, #tpu.memory_space<vmem>>, vector<1x1x8x8xbf16>,
    %44 = vector.extract_strided_slice %15 {offsets = [0, 24], sizes = [8, 8], strides = [1, 1]} : vector<8x32xbf16> to vector<8x8xbf16>
    %c0_39 = arith.constant 0 : index
    %c3_40 = arith.constant 3 : index
    %c0_41 = arith.constant 0 : index
    %c0_42 = arith.constant 0 : index
    %45 = vector.load %arg9[%c0_39, %c3_40, %c0_41, %c0_42] : memref<1x4x8x8xbf16, #tpu.memory_space<vmem>>, vector<1x1x8x8xbf16>
    %46 = vector.shape_cast %45 : vector<1x1x8x8xbf16> to vector<8x8xbf16>
    %47 = vector.shape_cast %44 : vector<8x8xbf16> to vector<1x1x8x8xbf16>
    tpu.vector_store %arg9[%c0_39, %c3_40, %c0_41, %c0_42], %47 {strides = array<i32>} : memref<1x4x8x8xbf16, #tpu.memory_space<vmem>>, vector<1x1x8x8xbf16>,
    return
  }
  func.func @transform_0(%arg0: i32, %arg1: i32) -> (i32, i32, i32) {
    %c0_i32 = arith.constant 0 : i32
    %c0_i32_0 = arith.constant 0 : i32
    return %arg0, %arg1, %c0_i32 : i32, i32, i32
  }
  func.func @transform_1(%arg0: i32, %arg1: i32) -> (i32, i32, i32) {
    %c0_i32 = arith.constant 0 : i32
    %c0_i32_0 = arith.constant 0 : i32
    return %arg0, %arg1, %c0_i32 : i32, i32, i32
  }
  func.func @transform_2(%arg0: i32, %arg1: i32) -> (i32, i32) {
    %c0_i32 = arith.constant 0 : i32
    %c0_i32_0 = arith.constant 0 : i32
    %c0_i32_1 = arith.constant 0 : i32
    return %c0_i32, %c0_i32_0 : i32, i32
  }
  func.func @transform_3(%arg0: i32, %arg1: i32) -> (i32, i32) {
    %c0_i32 = arith.constant 0 : i32
    %c0_i32_0 = arith.constant 0 : i32
    %c0_i32_1 = arith.constant 0 : i32
    return %c0_i32, %c0_i32_0 : i32, i32
  }
  func.func @transform_4(%arg0: i32, %arg1: i32) -> (i32, i32) {
    %c0_i32 = arith.constant 0 : i32
    %c0_i32_0 = arith.constant 0 : i32
    %c0_i32_1 = arith.constant 0 : i32
    return %c0_i32, %c0_i32_0 : i32, i32
  }
  func.func @transform_5(%arg0: i32, %arg1: i32) -> (i32, i32) {
    %c0_i32 = arith.constant 0 : i32
    %c0_i32_0 = arith.constant 0 : i32
    %c0_i32_1 = arith.constant 0 : i32
    return %c0_i32, %c0_i32_0 : i32, i32
  }
  func.func @transform_6(%arg0: i32, %arg1: i32) -> (i32, i32, i32, i32) {
    %c0_i32 = arith.constant 0 : i32
    %c0_i32_0 = arith.constant 0 : i32
    %c0_i32_1 = arith.constant 0 : i32
    return %arg0, %c0_i32, %arg1, %c0_i32_0 : i32, i32, i32, i32
  }
  func.func @transform_7(%arg0: i32, %arg1: i32) -> (i32, i32, i32, i32) {
    %c0_i32 = arith.constant 0 : i32
    %c0_i32_0 = arith.constant 0 : i32
    %c0_i32_1 = arith.constant 0 : i32
    return %arg0, %c0_i32, %arg1, %c0_i32_0 : i32, i32, i32, i32
  }
}

</mosaic_0001>

<llo_original>
// kernel: tpu_custom_call.1
$region0: #{tpu_custom_call.1}
  #allocation0 [shape = 'u32[]', space=smem, size = 0x4, offset = 0x4, fixed_abs, tag = 'smem constant byte address 0x4 - core index']
  #allocation1 [shape = 'u32[72,128]{1,0:T(1,128)}', space=vmem, size = 0x9000, scoped, tag = 'internal scratch']
  %s0 = inlined_call_operand.hbm [shape: bf16[2,16,32], index: 0, kind: input, shape index: {}]
  %s1 = inlined_call_operand.hbm [shape: bf16[2,16,32], index: 1, kind: input, shape index: {}]
  %s2 = inlined_call_operand.hbm [shape: bf16[32,32], index: 2, kind: input, shape index: {}]
  %s3 = inlined_call_operand.vmem [shape: f32[1,32], index: 3, kind: input, shape index: {}]
  %s4 = inlined_call_operand.hbm [shape: bf16[32,32], index: 4, kind: input, shape index: {}]
  %s5 = inlined_call_operand.vmem [shape: f32[1,32], index: 5, kind: input, shape index: {}]
  %s6 = inlined_call_operand.vmem [shape: bf16[2,4,16,8], index: 6, kind: output, shape index: {0}]
  %s7 = inlined_call_operand.vmem [shape: bf16[2,4,16,8], index: 7, kind: output, shape index: {1}]
  %8 = xla_tuple %s6, %s7
  %s9 = sld [smem:[#allocation0]]
  $region155: #{tpu_custom_call.1} parent=0
    _
  %s11 = ssub.s32 1, %s9
  %s12 = scalar_select 0, %s11, %s9
  $region1: #{tpu_custom_call.1} parent=0
    #allocation2 [shape = 'u8[4096]{0}', space=vmem, size = 0x1000, scoped, tag = 'input window, operand 0']
    #allocation3 [shape = 's32[2]{0}', space=sflag, size = 0x8, scoped, tag = 'scoped memory for tpu_custom_call.1']
    #allocation4 [shape = 'u8[4096]{0}', space=vmem, size = 0x1000, scoped, tag = 'input window, operand 1']
    #allocation5 [shape = 's32[2]{0}', space=sflag, size = 0x8, scoped, tag = 'scoped memory for tpu_custom_call.1']
    #allocation6 [shape = 'u8[8192]{0}', space=vmem, size = 0x2000, scoped, tag = 'input window, operand 2, single buffered']
    #allocation7 [shape = 'u8[8192]{0}', space=vmem, size = 0x2000, scoped, tag = 'input window, operand 4, single buffered']
    #allocation8 [shape = 's32[1]{0}', space=sflag, size = 0x4, scoped, tag = 'scoped memory for tpu_custom_call.1']
    #allocation9 [shape = 'u8[16384]{0}', space=vmem, size = 0x4000, scoped, tag = 'output window, operand 0']
    #allocation10 [shape = 'u8[16384]{0}', space=vmem, size = 0x4000, scoped, tag = 'output window, operand 1']
    %13 = vsyncpa [#allocation3], 0
    %s14 = scalar_lea.sflag [#allocation3], 1
    %15 = vsyncpa %s14, 0
    %16 = vsyncpa [#allocation5], 0
    %s17 = scalar_lea.sflag [#allocation5], 1
    %18 = vsyncpa %s17, 0
    %19 = vsyncpa [#allocation8], 0
    loop: start=0, step=1, limit=6
    $region2: #{tpu_custom_call.1} parent=1 // loop_pre_header
      _
    $region3: #{tpu_custom_call.1} parent=1 // loop_header
      %s21 = sphi 0, %s25
      %p22 = scmp.ge.s32.totalorder %s21, 6
      %s28 = sphi 0, %s40
      %s29 = sphi 0, %s36
      %s30 = sphi 0, %s28
      %s31 = sphi 0, %s29
      %s32 = sphi 0, %s30
      %s33 = sphi 0, %s31
      %s45 = sphi 0, %s47
      %s48 = sphi 0, %s45
      %s49 = sphi 0, %s48
      %s65 = sphi 0, %s49
      %s73 = sphi 0, %s75
      %s76 = sphi 0, %s73
      %s77 = sphi 0, %s76
      %s93 = sphi 0, %s77
      %s97 = sphi 0, %s97
      %s99 = sphi 0, %s97
      %s100 = sphi 0, %s99
      %s114 = sphi 0, %s100
      %s118 = sphi 0, %s118
      %s120 = sphi 0, %s118
      %s121 = sphi 0, %s120
      %s135 = sphi 0, %s121
      %s139 = sphi 0, %s139
      %s141 = sphi 0, %s139
      %s142 = sphi 0, %s141
      %s156 = sphi 0, %s142
      %s160 = sphi 0, %s160
      %s162 = sphi 0, %s160
      %s163 = sphi 0, %s162
      %s177 = sphi 0, %s163
      %s185 = sphi 0, %s187
      %s188 = sphi 0, %s185
      %s189 = sphi 0, %s188
      %s205 = sphi 0, %s189
      %s213 = sphi 0, %s215
      %s216 = sphi 0, %s213
      %s217 = sphi 0, %s216
      %s233 = sphi 0, %s217
    $region4: #{tpu_custom_call.1} parent=1 // loop_header_branch
      %24 = sbr.rel (%p22) target = $region8
    $region5: #{tpu_custom_call.1} parent=1 // loop_body
      %s26 = ssub.s32 %s21, 1
      %s27 = ssub.s32 %s21, 2
      %s34 = sadd.s32 1, %s29
      %p35 = scmp.ge.s32.totalorder %s34, 2
      %s36 = scalar_select %p35, 0, %s34
      %s37 = sadd.s32 1, %s28
      %s38 = scalar_select %p35, %s37, %s28
      %p39 = scmp.ge.s32.totalorder %s38, 2
      %s40 = scalar_select %p39, 0, %s38
      %s41 = ssub.s32 %s28, %s40
      %s42 = ssub.s32 %s29, %s36
      %s43 = sor.u32 %s41, %s42
      %p44 = scmp.eq.s32.totalorder %s43, 0
      %s46 = sadd.s32 %s45, 1
      %s47 = scalar_select %p44, %s45, %s46
      %p50 = pneg %p44
      %p51 = scmp.eq.s32.totalorder %s21, 3
      %p52 = por %p50, %p51
      %p53 = scmp.ne.s32.totalorder %s45, %s48
      %p54 = scmp.eq.s32.totalorder %s21, 0
      %p55 = por %p53, %p54
      %p56 = scmp.ne.s32.totalorder %s45, %s48
      %p57 = scmp.eq.s32.totalorder %s26, 3
      %p58 = por %p56, %p57
      %p59 = scmp.ne.s32.totalorder %s48, %s49
      %p60 = scmp.eq.s32.totalorder %s26, 0
      %p61 = por %p59, %p60
      %p62 = scmp.ne.s32.totalorder %s48, %s49
      %p63 = scmp.eq.s32.totalorder %s27, 3
      %p64 = por %p62, %p63
      %p66 = scmp.ne.s32.totalorder %s49, %s65
      %p67 = scmp.eq.s32.totalorder %s27, 0
      %p68 = por %p66, %p67
      %s69 = ssub.s32 %s28, %s40
      %s70 = ssub.s32 %s29, %s36
      %s71 = sor.u32 %s69, %s70
      %p72 = scmp.eq.s32.totalorder %s71, 0
      %s74 = sadd.s32 %s73, 1
      %s75 = scalar_select %p72, %s73, %s74
      %p78 = pneg %p72
      %p79 = scmp.eq.s32.totalorder %s21, 3
      %p80 = por %p78, %p79
      %p81 = scmp.ne.s32.totalorder %s73, %s76
      %p82 = scmp.eq.s32.totalorder %s21, 0
      %p83 = por %p81, %p82
      %p84 = scmp.ne.s32.totalorder %s73, %s76
      %p85 = scmp.eq.s32.totalorder %s26, 3
      %p86 = por %p84, %p85
      %p87 = scmp.ne.s32.totalorder %s76, %s77
      %p88 = scmp.eq.s32.totalorder %s26, 0
      %p89 = por %p87, %p88
      %p90 = scmp.ne.s32.totalorder %s76, %s77
      %p91 = scmp.eq.s32.totalorder %s27, 3
      %p92 = por %p90, %p91
      %p94 = scmp.ne.s32.totalorder %s77, %s93
      %p95 = scmp.eq.s32.totalorder %s27, 0
      %p96 = por %p94, %p95
      %s98 = sadd.s32 %s97, 1
      %p101 = scmp.eq.s32.totalorder %s21, 3
      %p102 = scmp.ne.s32.totalorder %s97, %s99
      %p103 = scmp.eq.s32.totalorder %s21, 0
      %p104 = por %p102, %p103
      %p105 = scmp.ne.s32.totalorder %s97, %s99
      %p106 = scmp.eq.s32.totalorder %s26, 3
      %p107 = por %p105, %p106
      %p108 = scmp.ne.s32.totalorder %s99, %s100
      %p109 = scmp.eq.s32.totalorder %s26, 0
      %p110 = por %p108, %p109
      %p111 = scmp.ne.s32.totalorder %s99, %s100
      %p112 = scmp.eq.s32.totalorder %s27, 3
      %p113 = por %p111, %p112
      %p115 = scmp.ne.s32.totalorder %s100, %s114
      %p116 = scmp.eq.s32.totalorder %s27, 0
      %p117 = por %p115, %p116
      %s119 = sadd.s32 %s118, 1
      %p122 = scmp.eq.s32.totalorder %s21, 3
      %p123 = scmp.ne.s32.totalorder %s118, %s120
      %p124 = scmp.eq.s32.totalorder %s21, 0
      %p125 = por %p123, %p124
      %p126 = scmp.ne.s32.totalorder %s118, %s120
      %p127 = scmp.eq.s32.totalorder %s26, 3
      %p128 = por %p126, %p127
      %p129 = scmp.ne.s32.totalorder %s120, %s121
      %p130 = scmp.eq.s32.totalorder %s26, 0
      %p131 = por %p129, %p130
      %p132 = scmp.ne.s32.totalorder %s120, %s121
      %p133 = scmp.eq.s32.totalorder %s27, 3
      %p134 = por %p132, %p133
      %p136 = scmp.ne.s32.totalorder %s121, %s135
      %p137 = scmp.eq.s32.totalorder %s27, 0
      %p138 = por %p136, %p137
      %s140 = sadd.s32 %s139, 1
      %p143 = scmp.eq.s32.totalorder %s21, 3
      %p144 = scmp.ne.s32.totalorder %s139, %s141
      %p145 = scmp.eq.s32.totalorder %s21, 0
      %p146 = por %p144, %p145
      %p147 = scmp.ne.s32.totalorder %s139, %s141
      %p148 = scmp.eq.s32.totalorder %s26, 3
      %p149 = por %p147, %p148
      %p150 = scmp.ne.s32.totalorder %s141, %s142
      %p151 = scmp.eq.s32.totalorder %s26, 0
      %p152 = por %p150, %p151
      %p153 = scmp.ne.s32.totalorder %s141, %s142
      %p154 = scmp.eq.s32.totalorder %s27, 3
      %p155 = por %p153, %p154
      %p157 = scmp.ne.s32.totalorder %s142, %s156
      %p158 = scmp.eq.s32.totalorder %s27, 0
      %p159 = por %p157, %p158
      %s161 = sadd.s32 %s160, 1
      %p164 = scmp.eq.s32.totalorder %s21, 3
      %p165 = scmp.ne.s32.totalorder %s160, %s162
      %p166 = scmp.eq.s32.totalorder %s21, 0
      %p167 = por %p165, %p166
      %p168 = scmp.ne.s32.totalorder %s160, %s162
      %p169 = scmp.eq.s32.totalorder %s26, 3
      %p170 = por %p168, %p169
      %p171 = scmp.ne.s32.totalorder %s162, %s163
      %p172 = scmp.eq.s32.totalorder %s26, 0
      %p173 = por %p171, %p172
      %p174 = scmp.ne.s32.totalorder %s162, %s163
      %p175 = scmp.eq.s32.totalorder %s27, 3
      %p176 = por %p174, %p175
      %p178 = scmp.ne.s32.totalorder %s163, %s177
      %p179 = scmp.eq.s32.totalorder %s27, 0
      %p180 = por %p178, %p179
      %s181 = ssub.s32 %s28, %s40
      %s182 = ssub.s32 %s29, %s36
      %s183 = sor.u32 %s181, %s182
      %p184 = scmp.eq.s32.totalorder %s183, 0
      %s186 = sadd.s32 %s185, 1
      %s187 = scalar_select %p184, %s185, %s186
      %p190 = pneg %p184
      %p191 = scmp.eq.s32.totalorder %s21, 3
      %p192 = por %p190, %p191
      %p193 = scmp.ne.s32.totalorder %s185, %s188
      %p194 = scmp.eq.s32.totalorder %s21, 0
      %p195 = por %p193, %p194
      %p196 = scmp.ne.s32.totalorder %s185, %s188
      %p197 = scmp.eq.s32.totalorder %s26, 3
      %p198 = por %p196, %p197
      %p199 = scmp.ne.s32.totalorder %s188, %s189
      %p200 = scmp.eq.s32.totalorder %s26, 0
      %p201 = por %p199, %p200
      %p202 = scmp.ne.s32.totalorder %s188, %s189
      %p203 = scmp.eq.s32.totalorder %s27, 3
      %p204 = por %p202, %p203
      %p206 = scmp.ne.s32.totalorder %s189, %s205
      %p207 = scmp.eq.s32.totalorder %s27, 0
      %p208 = por %p206, %p207
      %s209 = ssub.s32 %s28, %s40
      %s210 = ssub.s32 %s29, %s36
      %s211 = sor.u32 %s209, %s210
      %p212 = scmp.eq.s32.totalorder %s211, 0
      %s214 = sadd.s32 %s213, 1
      %s215 = scalar_select %p212, %s213, %s214
      %p218 = pneg %p212
      %p219 = scmp.eq.s32.totalorder %s21, 3
      %p220 = por %p218, %p219
      %p221 = scmp.ne.s32.totalorder %s213, %s216
      %p222 = scmp.eq.s32.totalorder %s21, 0
      %p223 = por %p221, %p222
      %p224 = scmp.ne.s32.totalorder %s213, %s216
      %p225 = scmp.eq.s32.totalorder %s26, 3
      %p226 = por %p224, %p225
      %p227 = scmp.ne.s32.totalorder %s216, %s217
      %p228 = scmp.eq.s32.totalorder %s26, 0
      %p229 = por %p227, %p228
      %p230 = scmp.ne.s32.totalorder %s216, %s217
      %p231 = scmp.eq.s32.totalorder %s27, 3
      %p232 = por %p230, %p231
      %p234 = scmp.ne.s32.totalorder %s217, %s233
      %p235 = scmp.eq.s32.totalorder %s27, 0
      %p236 = por %p234, %p235
      %p237 = scmp.le.s32.totalorder 1, %s21
      %p238 = scmp.lt.s32.totalorder %s21, 5
      %p239 = pnand %p237, %p238
      %p240 = pneg %p239
      // Predicated region
      $region9: #{tpu_custom_call.1} parent=5 // pred_check
        _
      $region10: #{tpu_custom_call.1} parent=5 // pred_check_branch
        %242 = sbr.rel (%p239) target = $region12
      $region11: #{tpu_custom_call.1} parent=5 // pred_region
        %s243 = ssub.s32 %s21, 1
        // Predicated region
        $region13: #{tpu_custom_call.1} parent=11 // pred_check
          %p244 = pneg %p110
        $region14: #{tpu_custom_call.1} parent=11 // pred_check_branch
          %246 = sbr.rel (%p244) target = $region16
        $region15: #{tpu_custom_call.1} parent=11 // pred_region
          %248 = vsyncadd [#allocation5], 0
          %s249 = sshll.u32 %s2, 4
          %s250 = int_to_ptr.hbm [resolvable:$true] %s249
          %s251 = sshll.u32 [#allocation6], 4
          %s252 = int_to_ptr.vmem [resolvable:$true] %s251
          %257 = dma.hbm_to_vmem [thread:$0]  %s250, 256, %s252, [#allocation5], 64, 64, 4
        $region16: #{tpu_custom_call.1} parent=11 // pred_fallthru
          _
        // Predicated region
        $region17: #{tpu_custom_call.1} parent=11 // pred_check
          %p258 = pneg %p131
        $region18: #{tpu_custom_call.1} parent=11 // pred_check_branch
          %260 = sbr.rel (%p258) target = $region20
        $region19: #{tpu_custom_call.1} parent=11 // pred_region
          _
        $region20: #{tpu_custom_call.1} parent=11 // pred_fallthru
          _
        // Predicated region
        $region21: #{tpu_custom_call.1} parent=11 // pred_check
          %p261 = pneg %p152
        $region22: #{tpu_custom_call.1} parent=11 // pred_check_branch
          %263 = sbr.rel (%p261) target = $region24
        $region23: #{tpu_custom_call.1} parent=11 // pred_region
          %265 = vsyncadd [#allocation8], 0
          %s266 = sshll.u32 %s4, 4
          %s267 = int_to_ptr.hbm [resolvable:$true] %s266
          %s268 = sshll.u32 [#allocation7], 4
          %s269 = int_to_ptr.vmem [resolvable:$true] %s268
          %274 = dma.hbm_to_vmem [thread:$0]  %s267, 256, %s269, [#allocation8], 64, 64, 4
        $region24: #{tpu_custom_call.1} parent=11 // pred_fallthru
          _
        // Predicated region
        $region25: #{tpu_custom_call.1} parent=11 // pred_check
          %p275 = pneg %p173
        $region26: #{tpu_custom_call.1} parent=11 // pred_check_branch
          %277 = sbr.rel (%p275) target = $region28
        $region27: #{tpu_custom_call.1} parent=11 // pred_region
          _
        $region28: #{tpu_custom_call.1} parent=11 // pred_fallthru
          _
      $region12: #{tpu_custom_call.1} parent=5 // pred_fallthru
        _
      %p278 = scmp.lt.s32.totalorder %s21, 4
      // Predicated region
      $region29: #{tpu_custom_call.1} parent=5 // pred_check
        %p279 = pneg %p278
      $region30: #{tpu_custom_call.1} parent=5 // pred_check_branch
        %281 = sbr.rel (%p279) target = $region32
      $region31: #{tpu_custom_call.1} parent=5 // pred_region
        // Predicated region
        $region33: #{tpu_custom_call.1} parent=31 // pred_check
          %p282 = pneg %p55
        $region34: #{tpu_custom_call.1} parent=31 // pred_check_branch
          %284 = sbr.rel (%p282) target = $region36
        $region35: #{tpu_custom_call.1} parent=31 // pred_region
          %s285 = sand.u32 %s45, 1
          %s286 = scalar_lea.sflag [#allocation3], %s285
          %s287 = sand.u32 %s45, 1
          %s288 = smul.addr %s287, 4
          %s289 = scalar_lea.vmem [#allocation2], %s288
          %291 = vsyncadd %s286, 0
          %s292 = smul.addr %s28, 2
          %s293 = sadd.s32 %s29, %s292
          %s294 = smul.addr %s293, 4
          %s295 = scalar_lea.hbm %s0, %s294
          %s297 = sshll.u32 %s295, 4
          %s298 = int_to_ptr.hbm [resolvable:$true] %s297
          %s299 = sshll.u32 %s289, 4
          %s300 = int_to_ptr.vmem [resolvable:$true] %s299
          %302 = dma.hbm_to_vmem [thread:$0]  %s298, 64, %s300, %s286
        $region36: #{tpu_custom_call.1} parent=31 // pred_fallthru
          _
        // Predicated region
        $region37: #{tpu_custom_call.1} parent=31 // pred_check
          %p303 = pneg %p83
        $region38: #{tpu_custom_call.1} parent=31 // pred_check_branch
          %305 = sbr.rel (%p303) target = $region40
        $region39: #{tpu_custom_call.1} parent=31 // pred_region
          %s306 = sand.u32 %s21, 1
          %s307 = scalar_lea.sflag [#allocation5], %s306
          %s308 = sand.u32 %s73, 1
          %s309 = smul.addr %s308, 4
          %s310 = scalar_lea.vmem [#allocation4], %s309
          %312 = vsyncadd %s307, 0
          %s313 = smul.addr %s28, 2
          %s314 = sadd.s32 %s29, %s313
          %s315 = smul.addr %s314, 4
          %s316 = scalar_lea.hbm %s1, %s315
          %s318 = sshll.u32 %s316, 4
          %s319 = int_to_ptr.hbm [resolvable:$true] %s318
          %s320 = sshll.u32 %s310, 4
          %s321 = int_to_ptr.vmem [resolvable:$true] %s320
          %323 = dma.hbm_to_vmem [thread:$0]  %s319, 64, %s321, %s307
        $region40: #{tpu_custom_call.1} parent=31 // pred_fallthru
          _
      $region32: #{tpu_custom_call.1} parent=5 // pred_fallthru
        _
      %p324 = scmp.le.s32.totalorder 1, %s21
      %p325 = scmp.lt.s32.totalorder %s21, 5
      %p326 = pnand %p324, %p325
      %p327 = pneg %p326
      // Predicated region
      $region41: #{tpu_custom_call.1} parent=5 // pred_check
        _
      $region42: #{tpu_custom_call.1} parent=5 // pred_check_branch
        %329 = sbr.rel (%p326) target = $region44
      $region43: #{tpu_custom_call.1} parent=5 // pred_region
        %s330 = ssub.s32 %s21, 1
        %s331 = sand.u32 %s48, 1
        %s332 = scalar_lea.sflag [#allocation3], %s331
        %s333 = sand.u32 %s48, 1
        %s334 = smul.addr %s333, 4
        %s335 = scalar_lea.vmem [#allocation2], %s334
        // Predicated region
        $region45: #{tpu_custom_call.1} parent=43 // pred_check
          %p336 = pneg %p61
        $region46: #{tpu_custom_call.1} parent=43 // pred_check_branch
          %338 = sbr.rel (%p336) target = $region48
        $region47: #{tpu_custom_call.1} parent=43 // pred_region
          %340 = dma.done %s332, 64
        $region48: #{tpu_custom_call.1} parent=43 // pred_fallthru
          _
        %s341 = sand.u32 %s26, 1
        %s342 = scalar_lea.sflag [#allocation5], %s341
        %s343 = sand.u32 %s76, 1
        %s344 = smul.addr %s343, 4
        %s345 = scalar_lea.vmem [#allocation4], %s344
        // Predicated region
        $region49: #{tpu_custom_call.1} parent=43 // pred_check
          %p346 = pneg %p89
        $region50: #{tpu_custom_call.1} parent=43 // pred_check_branch
          %348 = sbr.rel (%p346) target = $region52
        $region51: #{tpu_custom_call.1} parent=43 // pred_region
          %350 = dma.done %s342, 64
        $region52: #{tpu_custom_call.1} parent=43 // pred_fallthru
          _
        // Predicated region
        $region53: #{tpu_custom_call.1} parent=43 // pred_check
          %p351 = pneg %p110
        $region54: #{tpu_custom_call.1} parent=43 // pred_check_branch
          %353 = sbr.rel (%p351) target = $region56
        $region55: #{tpu_custom_call.1} parent=43 // pred_region
          %355 = dma.done [#allocation5], 256
        $region56: #{tpu_custom_call.1} parent=43 // pred_fallthru
          _
        // Predicated region
        $region57: #{tpu_custom_call.1} parent=43 // pred_check
          %p356 = pneg %p152
        $region58: #{tpu_custom_call.1} parent=43 // pred_check_branch
          %358 = sbr.rel (%p356) target = $region60
        $region59: #{tpu_custom_call.1} parent=43 // pred_region
          %360 = dma.done [#allocation8], 256
        $region60: #{tpu_custom_call.1} parent=43 // pred_fallthru
          _
        %s361 = sand.u32 %s48, 1
        %s362 = scalar_lea.sflag [#allocation3], %s361
        %s363 = sand.u32 %s48, 1
        %s364 = smul.addr %s363, 4
        %s365 = scalar_lea.vmem [#allocation2], %s364
        %p366 = pneg %p61
        %p367 = pneg %p58
        %s368 = sand.u32 %s26, 1
        %s369 = scalar_lea.sflag [#allocation5], %s368
        %s370 = sand.u32 %s76, 1
        %s371 = smul.addr %s370, 4
        %s372 = scalar_lea.vmem [#allocation4], %s371
        %p373 = pneg %p89
        %p374 = pneg %p86
        %p375 = pneg %p110
        %p376 = pneg %p107
        %p377 = pneg %p131
        %p378 = pneg %p128
        %p379 = pneg %p152
        %p380 = pneg %p149
        %p381 = pneg %p173
        %p382 = pneg %p170
        %p383 = pneg %p201
        %p384 = pneg %p198
        %s385 = sand.u32 %s188, 1
        %s386 = sand.u32 %s188, 1
        %s387 = smul.addr %s386, 16
        %s388 = scalar_lea.vmem [#allocation9], %s387
        %p389 = pneg %p229
        %p390 = pneg %p226
        %s391 = sand.u32 %s216, 1
        %s392 = sand.u32 %s216, 1
        %s393 = smul.addr %s392, 16
        %s394 = scalar_lea.vmem [#allocation10], %s393
        %v396 = vld [vmem:[%s335] sm:$0xf]
        %v397 = vld [vmem:[#allocation6] sm:$0xf]
        %v398 = vld [vmem:[#allocation6 + $0x4] sm:$0xf]
        %v399 = vld [vmem:[#allocation6 + $0x8] sm:$0xf]
        %v400 = vld [vmem:[#allocation6 + $0xc] sm:$0xf]
        %v401 = vld [vmem:[%s3] sm:$0x1]
        %v403 = vperm.slane %v401, 0
        %v409 = vunpack.c.l.b16 %v397
        %v410 = vunpack.c.l.b16 %v398
        %v411 = vunpack.c.l.b16 %v399
        %v412 = vunpack.c.l.b16 %v400
        %v413 = vpack.c.b16 %v410, %v409
        %v414 = vpack.c.b16 %v412, %v411
        %vm417 = vcmask 261120
        %v419 = vsel %vm417, %v396, 0
        %421 = vmatpush.bf16.msra.mxu0 0
        %422 = vmatpush.bf16.msra.mxu0 0
        %423 = vmatpush.bf16.msra.mxu0 0
        %424 = vmatpush.bf16.msra.mxu0 0
        %425 = vmatpush.bf16.msra.mxu0 0
        %426 = vmatpush.bf16.msra.mxu0 0
        %427 = vmatpush.bf16.msra.mxu0 %v414
        %428 = vmatpush.bf16.msra.mxu0 %v413
        %429 = vmatmul.bf16.gmra.mxu0 %v419
        %v430 = vpop.f32.mrf.mxu0
        %v431 = vadd.f32 %v403, %v430
        %v432 = vpop.f32.mrf.mxu0
        %433 = vdwg.mxu0
        %v434 = vld [vmem:[%s345] sm:$0xf]
        %v435 = vld [vmem:[#allocation7] sm:$0xf]
        %v436 = vld [vmem:[#allocation7 + $0x4] sm:$0xf]
        %v437 = vld [vmem:[#allocation7 + $0x8] sm:$0xf]
        %v438 = vld [vmem:[#allocation7 + $0xc] sm:$0xf]
        %v439 = vld [vmem:[%s5] sm:$0x1]
        %v441 = vperm.slane %v439, 0
        %v447 = vunpack.c.l.b16 %v435
        %v448 = vunpack.c.l.b16 %v436
        %v449 = vunpack.c.l.b16 %v437
        %v450 = vunpack.c.l.b16 %v438
        %v451 = vpack.c.b16 %v448, %v447
        %v452 = vpack.c.b16 %v450, %v449
        %v456 = vsel %vm417, %v434, 0
        %458 = vmatpush.bf16.msra.mxu0 0
        %459 = vmatpush.bf16.msra.mxu0 0
        %460 = vmatpush.bf16.msra.mxu0 0
        %461 = vmatpush.bf16.msra.mxu0 0
        %462 = vmatpush.bf16.msra.mxu0 0
        %463 = vmatpush.bf16.msra.mxu0 0
        %464 = vmatpush.bf16.msra.mxu0 %v452
        %465 = vmatpush.bf16.msra.mxu0 %v451
        %466 = vmatmul.bf16.gmra.mxu0 %v456
        %v467 = vpop.f32.mrf.mxu0
        %v468 = vadd.f32 %v441, %v467
        %v469 = vpop.f32.mrf.mxu0
        %470 = vdwg.mxu0
        %v471 = vpack.c.bf16 %v431, %v431
        %v472 = vpack.c.bf16 %v468, %v468
        %vm473 = vcmask 60416
        %474 = vst.msk [vmem:[%s388] sm:$0xf] %vm473, %v471
        %475 = vst.msk [vmem:[%s394] sm:$0xf] %vm473, %v472
        %477 = vrot.lane.b32.xlu0 %v471, 120
        %v478 = vpop.permute.xlu0 %477
        %s480 = scalar_lea.vmem %s388, 4 [#allocation9]
        %481 = vst.msk [vmem:[%s480] sm:$0xf] %vm473, %v478
        %483 = vrot.lane.b32.xlu0 %v472, 120
        %v484 = vpop.permute.xlu0 %483
        %s486 = scalar_lea.vmem %s394, 4 [#allocation10]
        %487 = vst.msk [vmem:[%s486] sm:$0xf] %vm473, %v484
        %488 = vrot.lane.b32.xlu0 %v471, 112
        %v489 = vpop.permute.xlu0 %488
        %s491 = scalar_lea.vmem %s388, 8 [#allocation9]
        %492 = vst.msk [vmem:[%s491] sm:$0xf] %vm473, %v489
        %493 = vrot.lane.b32.xlu0 %v472, 112
        %v494 = vpop.permute.xlu0 %493
        %s496 = scalar_lea.vmem %s394, 8 [#allocation10]
        %497 = vst.msk [vmem:[%s496] sm:$0xf] %vm473, %v494
        %498 = vrot.lane.b32.xlu0 %v471, 104
        %v499 = vpop.permute.xlu0 %498
        %s501 = scalar_lea.vmem %s388, 12 [#allocation9]
        %502 = vst.msk [vmem:[%s501] sm:$0xf] %vm473, %v499
        %503 = vrot.lane.b32.xlu0 %v472, 104
        %v504 = vpop.permute.xlu0 %503
        %s506 = scalar_lea.vmem %s394, 12 [#allocation10]
        %507 = vst.msk [vmem:[%s506] sm:$0xf] %vm473, %v504
        %s508 = sand.u32 %s188, 1
        %s509 = sand.u32 %s188, 1
        %s510 = smul.addr %s509, 16
        %s511 = scalar_lea.vmem [#allocation9], %s510
        %s512 = sand.u32 %s216, 1
        %s513 = sand.u32 %s216, 1
        %s514 = smul.addr %s513, 16
        %s515 = scalar_lea.vmem [#allocation10], %s514
        // Predicated region
        $region61: #{tpu_custom_call.1} parent=43 // pred_check
          %p516 = pneg %p198
        $region62: #{tpu_custom_call.1} parent=43 // pred_check_branch
          %518 = sbr.rel (%p516) target = $region64
        $region63: #{tpu_custom_call.1} parent=43 // pred_region
          %s519 = smul.addr %s30, 8
          %s520 = sadd.s32 %s31, %s519
          %s521 = smul.addr %s520, 4
          %s522 = scalar_lea.vmem %s6, %s521
          // Predicated region
          $region65: #{tpu_custom_call.1} parent=63 // pred_check
            _
          $region66: #{tpu_custom_call.1} parent=63 // pred_check_branch
            %524 = sbr.rel (0) target = $region68
          $region67: #{tpu_custom_call.1} parent=63 // pred_region
            // Predicated region
            $region69: #{tpu_custom_call.1} parent=67 // pred_check
              _
            $region70: #{tpu_custom_call.1} parent=67 // pred_check_branch
              %526 = sbr.rel target = $region72
            $region71: #{tpu_custom_call.1} parent=67 // pred_region
              // Predicated region
              $region84: #{tpu_custom_call.1} parent=71 // pred_check
                _
              $region85: #{tpu_custom_call.1} parent=71 // pred_check_branch
                %548 = sbr.rel (0) target = $region87
              $region86: #{tpu_custom_call.1} parent=71 // pred_region
                loop: start=0, step=1, limit=1
                $region88: #{tpu_custom_call.1} parent=86 // loop_pre_header
                  _
                $region89: #{tpu_custom_call.1} parent=86 // loop_header
                  %s550 = sphi 0, %s554
                  %p551 = scmp.ge.s32.totalorder %s550, 1
                  %s555 = sphi %s511, %s511
                  %s556 = sphi %s522, %s522
                $region90: #{tpu_custom_call.1} parent=86 // loop_header_branch
                  %553 = sbr.rel (%p551) target = $region94
                $region91: #{tpu_custom_call.1} parent=86 // loop_body
                  _
                $region92: #{tpu_custom_call.1} parent=86 // loop_footer
                  %s554 = sadd.s32 1, %s550
                $region93: #{tpu_custom_call.1} parent=86 // loop_footer_branch
                  %549 = sbr.rel target = $region89
                $region94: #{tpu_custom_call.1} parent=86 // loop_exit
                  _
                %s558 = ssub.s32 16, 1
                loop: start=0, step=1, limit=1
                $region95: #{tpu_custom_call.1} parent=86 // loop_pre_header
                  _
                $region96: #{tpu_custom_call.1} parent=86 // loop_header
                  %s560 = sphi 0, %s564
                  %p561 = scmp.ge.s32.totalorder %s560, 1
                  %s565 = sphi %s511, %s511
                  %s566 = sphi %s522, %s522
                $region97: #{tpu_custom_call.1} parent=86 // loop_header_branch
                  %563 = sbr.rel (%p561) target = $region101
                $region98: #{tpu_custom_call.1} parent=86 // loop_body
                  %v567 = vld [vmem:[%s565] sm:%s558]
                  %568 = vst [vmem:[%s566] sm:%s558] %v567
                  %v569 = vld [vmem:[%s565 + $0x4] sm:%s558]
                  %570 = vst [vmem:[%s566 + $0x8] sm:%s558] %v569
                  %v571 = vld [vmem:[%s565 + $0x8] sm:%s558]
                  %572 = vst [vmem:[%s566 + $0x10] sm:%s558] %v571
                  %v573 = vld [vmem:[%s565 + $0xc] sm:%s558]
                  %574 = vst [vmem:[%s566 + $0x18] sm:%s558] %v573
                $region99: #{tpu_custom_call.1} parent=86 // loop_footer
                  %s564 = sadd.s32 1, %s560
                $region100: #{tpu_custom_call.1} parent=86 // loop_footer_branch
                  %559 = sbr.rel target = $region96
                $region101: #{tpu_custom_call.1} parent=86 // loop_exit
                  _
              $region87: #{tpu_custom_call.1} parent=71 // pred_fallthru
                _
            $region72: #{tpu_custom_call.1} parent=67 // pred_fallthru
              _
            // Predicated region
            $region73: #{tpu_custom_call.1} parent=67 // pred_check
              _
            $region74: #{tpu_custom_call.1} parent=67 // pred_check_branch
              %528 = sbr.rel (0) target = $region76
            $region75: #{tpu_custom_call.1} parent=67 // pred_region
              %s530 = ssub.s32 16, 1
              loop: start=0, step=1, limit=1
              $region77: #{tpu_custom_call.1} parent=75 // loop_pre_header
                _
              $region78: #{tpu_custom_call.1} parent=75 // loop_header
                %s532 = sphi 0, %s536
                %p533 = scmp.ge.s32.totalorder %s532, 1
                %s537 = sphi %s511, %s511
                %s538 = sphi %s522, %s522
              $region79: #{tpu_custom_call.1} parent=75 // loop_header_branch
                %535 = sbr.rel (%p533) target = $region83
              $region80: #{tpu_custom_call.1} parent=75 // loop_body
                %v539 = vld [vmem:[%s537] sm:%s530]
                %540 = vst [vmem:[%s538] sm:%s530] %v539
                %v541 = vld [vmem:[%s537 + $0x4] sm:%s530]
                %542 = vst [vmem:[%s538 + $0x8] sm:%s530] %v541
                %v543 = vld [vmem:[%s537 + $0x8] sm:%s530]
                %544 = vst [vmem:[%s538 + $0x10] sm:%s530] %v543
                %v545 = vld [vmem:[%s537 + $0xc] sm:%s530]
                %546 = vst [vmem:[%s538 + $0x18] sm:%s530] %v545
              $region81: #{tpu_custom_call.1} parent=75 // loop_footer
                %s536 = sadd.s32 1, %s532
              $region82: #{tpu_custom_call.1} parent=75 // loop_footer_branch
                %531 = sbr.rel target = $region78
              $region83: #{tpu_custom_call.1} parent=75 // loop_exit
                _
            $region76: #{tpu_custom_call.1} parent=67 // pred_fallthru
              _
          $region68: #{tpu_custom_call.1} parent=63 // pred_fallthru
            _
          %575 = vnop
        $region64: #{tpu_custom_call.1} parent=43 // pred_fallthru
          _
        // Predicated region
        $region102: #{tpu_custom_call.1} parent=43 // pred_check
          %p576 = pneg %p226
        $region103: #{tpu_custom_call.1} parent=43 // pred_check_branch
          %578 = sbr.rel (%p576) target = $region105
        $region104: #{tpu_custom_call.1} parent=43 // pred_region
          %s579 = smul.addr %s30, 8
          %s580 = sadd.s32 %s31, %s579
          %s581 = smul.addr %s580, 4
          %s582 = scalar_lea.vmem %s7, %s581
          // Predicated region
          $region106: #{tpu_custom_call.1} parent=104 // pred_check
            _
          $region107: #{tpu_custom_call.1} parent=104 // pred_check_branch
            %584 = sbr.rel (0) target = $region109
          $region108: #{tpu_custom_call.1} parent=104 // pred_region
            // Predicated region
            $region110: #{tpu_custom_call.1} parent=108 // pred_check
              _
            $region111: #{tpu_custom_call.1} parent=108 // pred_check_branch
              %586 = sbr.rel target = $region113
            $region112: #{tpu_custom_call.1} parent=108 // pred_region
              // Predicated region
              $region125: #{tpu_custom_call.1} parent=112 // pred_check
                _
              $region126: #{tpu_custom_call.1} parent=112 // pred_check_branch
                %608 = sbr.rel (0) target = $region128
              $region127: #{tpu_custom_call.1} parent=112 // pred_region
                loop: start=0, step=1, limit=1
                $region129: #{tpu_custom_call.1} parent=127 // loop_pre_header
                  _
                $region130: #{tpu_custom_call.1} parent=127 // loop_header
                  %s610 = sphi 0, %s614
                  %p611 = scmp.ge.s32.totalorder %s610, 1
                  %s615 = sphi %s515, %s515
                  %s616 = sphi %s582, %s582
                $region131: #{tpu_custom_call.1} parent=127 // loop_header_branch
                  %613 = sbr.rel (%p611) target = $region135
                $region132: #{tpu_custom_call.1} parent=127 // loop_body
                  _
                $region133: #{tpu_custom_call.1} parent=127 // loop_footer
                  %s614 = sadd.s32 1, %s610
                $region134: #{tpu_custom_call.1} parent=127 // loop_footer_branch
                  %609 = sbr.rel target = $region130
                $region135: #{tpu_custom_call.1} parent=127 // loop_exit
                  _
                %s618 = ssub.s32 16, 1
                loop: start=0, step=1, limit=1
                $region136: #{tpu_custom_call.1} parent=127 // loop_pre_header
                  _
                $region137: #{tpu_custom_call.1} parent=127 // loop_header
                  %s620 = sphi 0, %s624
                  %p621 = scmp.ge.s32.totalorder %s620, 1
                  %s625 = sphi %s515, %s515
                  %s626 = sphi %s582, %s582
                $region138: #{tpu_custom_call.1} parent=127 // loop_header_branch
                  %623 = sbr.rel (%p621) target = $region142
                $region139: #{tpu_custom_call.1} parent=127 // loop_body
                  %v627 = vld [vmem:[%s625] sm:%s618]
                  %628 = vst [vmem:[%s626] sm:%s618] %v627
                  %v629 = vld [vmem:[%s625 + $0x4] sm:%s618]
                  %630 = vst [vmem:[%s626 + $0x8] sm:%s618] %v629
                  %v631 = vld [vmem:[%s625 + $0x8] sm:%s618]
                  %632 = vst [vmem:[%s626 + $0x10] sm:%s618] %v631
                  %v633 = vld [vmem:[%s625 + $0xc] sm:%s618]
                  %634 = vst [vmem:[%s626 + $0x18] sm:%s618] %v633
                $region140: #{tpu_custom_call.1} parent=127 // loop_footer
                  %s624 = sadd.s32 1, %s620
                $region141: #{tpu_custom_call.1} parent=127 // loop_footer_branch
                  %619 = sbr.rel target = $region137
                $region142: #{tpu_custom_call.1} parent=127 // loop_exit
                  _
              $region128: #{tpu_custom_call.1} parent=112 // pred_fallthru
                _
            $region113: #{tpu_custom_call.1} parent=108 // pred_fallthru
              _
            // Predicated region
            $region114: #{tpu_custom_call.1} parent=108 // pred_check
              _
            $region115: #{tpu_custom_call.1} parent=108 // pred_check_branch
              %588 = sbr.rel (0) target = $region117
            $region116: #{tpu_custom_call.1} parent=108 // pred_region
              %s590 = ssub.s32 16, 1
              loop: start=0, step=1, limit=1
              $region118: #{tpu_custom_call.1} parent=116 // loop_pre_header
                _
              $region119: #{tpu_custom_call.1} parent=116 // loop_header
                %s592 = sphi 0, %s596
                %p593 = scmp.ge.s32.totalorder %s592, 1
                %s597 = sphi %s515, %s515
                %s598 = sphi %s582, %s582
              $region120: #{tpu_custom_call.1} parent=116 // loop_header_branch
                %595 = sbr.rel (%p593) target = $region124
              $region121: #{tpu_custom_call.1} parent=116 // loop_body
                %v599 = vld [vmem:[%s597] sm:%s590]
                %600 = vst [vmem:[%s598] sm:%s590] %v599
                %v601 = vld [vmem:[%s597 + $0x4] sm:%s590]
                %602 = vst [vmem:[%s598 + $0x8] sm:%s590] %v601
                %v603 = vld [vmem:[%s597 + $0x8] sm:%s590]
                %604 = vst [vmem:[%s598 + $0x10] sm:%s590] %v603
                %v605 = vld [vmem:[%s597 + $0xc] sm:%s590]
                %606 = vst [vmem:[%s598 + $0x18] sm:%s590] %v605
              $region122: #{tpu_custom_call.1} parent=116 // loop_footer
                %s596 = sadd.s32 1, %s592
              $region123: #{tpu_custom_call.1} parent=116 // loop_footer_branch
                %591 = sbr.rel target = $region119
              $region124: #{tpu_custom_call.1} parent=116 // loop_exit
                _
            $region117: #{tpu_custom_call.1} parent=108 // pred_fallthru
              _
          $region109: #{tpu_custom_call.1} parent=104 // pred_fallthru
            _
          %635 = vnop
        $region105: #{tpu_custom_call.1} parent=43 // pred_fallthru
          _
      $region44: #{tpu_custom_call.1} parent=5 // pred_fallthru
        _
      %p636 = scmp.le.s32.totalorder 2, %s21
      // Predicated region
      $region143: #{tpu_custom_call.1} parent=5 // pred_check
        %p637 = pneg %p636
      $region144: #{tpu_custom_call.1} parent=5 // pred_check_branch
        %639 = sbr.rel (%p637) target = $region146
      $region145: #{tpu_custom_call.1} parent=5 // pred_region
        %s640 = ssub.s32 %s21, 2
        // Predicated region
        $region147: #{tpu_custom_call.1} parent=145 // pred_check
          %p641 = pneg %p204
        $region148: #{tpu_custom_call.1} parent=145 // pred_check_branch
          %643 = sbr.rel (%p641) target = $region150
        $region149: #{tpu_custom_call.1} parent=145 // pred_region
          %s644 = sand.u32 %s189, 1
          %s645 = sand.u32 %s189, 1
          %s646 = smul.addr %s645, 16
          %s647 = scalar_lea.vmem [#allocation9], %s646
        $region150: #{tpu_custom_call.1} parent=145 // pred_fallthru
          _
        // Predicated region
        $region151: #{tpu_custom_call.1} parent=145 // pred_check
          %p648 = pneg %p232
        $region152: #{tpu_custom_call.1} parent=145 // pred_check_branch
          %650 = sbr.rel (%p648) target = $region154
        $region153: #{tpu_custom_call.1} parent=145 // pred_region
          %s651 = sand.u32 %s217, 1
          %s652 = sand.u32 %s217, 1
          %s653 = smul.addr %s652, 16
          %s654 = scalar_lea.vmem [#allocation10], %s653
        $region154: #{tpu_custom_call.1} parent=145 // pred_fallthru
          _
      $region146: #{tpu_custom_call.1} parent=5 // pred_fallthru
        _
    $region6: #{tpu_custom_call.1} parent=1 // loop_footer
      %s25 = sadd.s32 1, %s21
    $region7: #{tpu_custom_call.1} parent=1 // loop_footer_branch
      %20 = sbr.rel target = $region3
    $region8: #{tpu_custom_call.1} parent=1 // loop_exit
      _
    %655 = vsyncpa [#allocation3], 1
    %s656 = scalar_lea.sflag [#allocation3], 1
    %657 = vsyncpa %s656, 1
    %658 = vsyncpa [#allocation5], 1
    %s659 = scalar_lea.sflag [#allocation5], 1
    %660 = vsyncpa %s659, 1
    %661 = vsyncpa [#allocation8], 1

</llo_original>
